<compile_context>
chip_gen: v7x
topology: tpu7x:2x2x1
jax: 0.10.0
libtpu: 0.0.40
codegen_flags: <defaults>
</compile_context>

<pallas_src>
import functools

import jax
import jax.numpy as jnp
from jax.experimental import pallas as pl
from jax.experimental.pallas import tpu as pltpu

LAMBDA_D = 0.08
LAMBDA_Q = 0.1

_LANES = 128
# Cap on statically-unrolled 128-lane chunks per tile (bounds code size while
# keeping per-grid-step bytes large enough to hide the ~0.35us step overhead).
_MAX_UNROLLED_CHUNKS = 64
# Use local vreg accumulators for the dot-product partials up to this many
# batch rows; beyond that, accumulate into the (VMEM-resident) output refs.
_LOCAL_ACC_MAX_ROWS = 32


def _cdiv(a, b):
    return -(-a // b)


def _round_up(x, m):
    return _cdiv(x, m) * m


def _vmem_capacity_bytes():
    try:
        info = pltpu.get_tpu_info()
        cap = int(getattr(info, "vmem_capacity_bytes"))
        if cap > 0:
            return cap
    except Exception:
        pass
    return 64 << 20  # conservative (v7x per-TensorCore)


def _tensorcores_per_chip():
    try:
        kind = jax.devices()[0].device_kind.lower()
    except Exception:
        return 1
    # Only v7x has 2 TensorCores per chip; v5e/v6e have 1.
    return 2 if ("v7" in kind or "7x" in kind) else 1


def _splade_partial_kernel(q_ref, p_ref, n_ref,
                           sp_ref, sn_ref, fq_ref, fp_ref, fn_ref,
                           *, nchunks, bd, tiles_per_core, d_true,
                           apply_mask, local_dot_acc):
    """Grid = (core, vocab_tile); vocab_tile is the reduction axis.

    sp_ref / sn_ref : (B, 128) f32 output accumulators (resident across the
                      vocab-tile axis); lane l holds the sum over columns
                      j == l (mod 128) of q*p / q*n.
    f*_ref          : (1, 128) f32 FLOPS partials: lane-folded
                      sum_j (sum_i |x_ij|)^2.
    """
    c = pl.program_id(0)
    k = pl.program_id(1)

    @pl.when(k == 0)
    def _init():
        sp_ref[...] = jnp.zeros_like(sp_ref)
        sn_ref[...] = jnp.zeros_like(sn_ref)
        fq_ref[...] = jnp.zeros_like(fq_ref)
        fp_ref[...] = jnp.zeros_like(fp_ref)
        fn_ref[...] = jnp.zeros_like(fn_ref)

    b = sp_ref.shape[0]
    fq = jnp.zeros((1, _LANES), jnp.float32)
    fp = jnp.zeros((1, _LANES), jnp.float32)
    fn = jnp.zeros((1, _LANES), jnp.float32)
    if local_dot_acc:
        sp = jnp.zeros((b, _LANES), jnp.float32)
        sn = jnp.zeros((b, _LANES), jnp.float32)

    if apply_mask:
        # Logical first column of this tile; may exceed d_true for the ragged
        # last tile or a duplicated tail tile (those columns are zeroed).
        tile_base = (c * tiles_per_core + k) * bd
        lane = jax.lax.broadcasted_iota(jnp.int32, (1, _LANES), 1)  # hoisted

    # Walk the large DMA block in 128-lane sub-chunks (static slices): bounds
    # vreg pressure for any B; steady state is vector mul/add plus one sublane
    # reduce per input per chunk.
    for ci in range(nchunks):
        sl = pl.ds(ci * _LANES, _LANES)
        qc = q_ref[:, sl].astype(jnp.float32)
        pc = p_ref[:, sl].astype(jnp.float32)
        nc = n_ref[:, sl].astype(jnp.float32)

        if apply_mask:
            col = lane + (tile_base + ci * _LANES)        # (1, 128) int32
            valid = col < d_true
            # jnp.where (not multiply): OOB bytes can be NaN/Inf garbage.
            qc = jnp.where(valid, qc, 0.0)
            pc = jnp.where(valid, pc, 0.0)
            nc = jnp.where(valid, nc, 0.0)

        dp = qc * pc
        dn = qc * nc
        if local_dot_acc:
            sp = sp + dp
            sn = sn + dn
        else:
            sp_ref[...] += dp
            sn_ref[...] += dn

        aq = jnp.sum(jnp.abs(qc), axis=0, keepdims=True)   # (1,128) column sums
        ap = jnp.sum(jnp.abs(pc), axis=0, keepdims=True)
        an = jnp.sum(jnp.abs(nc), axis=0, keepdims=True)
        fq = fq + aq * aq
        fp = fp + ap * ap
        fn = fn + an * an

    if local_dot_acc:
        sp_ref[...] += sp
        sn_ref[...] += sn
    fq_ref[...] += fq
    fp_ref[...] += fp
    fn_ref[...] += fn


def _splade_partials(q, p, n, *, num_cores, core_parallel):
    B, D = q.shape
    itemsize = jnp.dtype(q.dtype).itemsize

    # --- tile sizing (generation-aware) -----------------------------------
    cap = _vmem_capacity_bytes()
    input_budget = int(cap * 0.45)  # for 3 inputs x 2 pipeline buffers
    bd_vmem = max(_LANES,
                  (input_budget // (3 * 2 * max(B, 1) * itemsize))
                  // _LANES * _LANES)
    bd_unroll = _MAX_UNROLLED_CHUNKS * _LANES
    # keep >= ~3 vocab tiles per core so double-buffering overlaps DMA.
    bd_overlap = _round_up(_cdiv(D, num_cores * 3), _LANES)
    bd = max(_LANES, min(bd_vmem, bd_unroll, bd_overlap, _round_up(D, _LANES)))

    tiles_total = _cdiv(D, bd)
    tpc = _cdiv(tiles_total, num_cores)
    nchunks = bd // _LANES
    # Mask only needed when the last tile is ragged or the rectangular grid
    # over-covers the tile count (duplicated tail tiles are fully masked).
    apply_mask = (D % bd != 0) or (num_cores * tpc != tiles_total)
    local_dot_acc = B <= _LOCAL_ACC_MAX_ROWS

    footprint = 3 * 2 * B * bd * itemsize
    vmem_limit = int(min(cap - (2 << 20),
                         max(32 << 20, footprint + (16 << 20))))

    kernel = functools.partial(
        _splade_partial_kernel,
        nchunks=nchunks, bd=bd, tiles_per_core=tpc, d_true=D,
        apply_mask=apply_mask, local_dot_acc=local_dot_acc)

    last_tile = tiles_total - 1

    def in_map(c, k):
        # Clamp so a duplicated tail grid step DMAs an in-bounds block; its
        # contribution is zeroed in-kernel because the *logical* column base
        # (computed from the unclamped index) is >= D.
        t = c * tpc + k
        return (0, jnp.minimum(t, last_tile))

    in_spec = pl.BlockSpec((B, bd), in_map)
    acc_spec = pl.BlockSpec((None, B, _LANES), lambda c, k: (c, 0, 0))
    fl_spec = pl.BlockSpec((None, 1, _LANES), lambda c, k: (c, 0, 0))

    if core_parallel and num_cores > 1:
        dims = (pltpu.CORE_PARALLEL, pltpu.ARBITRARY)   # real 2-TC sharding (v7x)
    else:
        dims = (pltpu.ARBITRARY, pltpu.ARBITRARY)

    return pl.pallas_call(
        kernel,
        out_shape=(
            jax.ShapeDtypeStruct((num_cores, B, _LANES), jnp.float32),
            jax.ShapeDtypeStruct((num_cores, B, _LANES), jnp.float32),
            jax.ShapeDtypeStruct((num_cores, 1, _LANES), jnp.float32),
            jax.ShapeDtypeStruct((num_cores, 1, _LANES), jnp.float32),
            jax.ShapeDtypeStruct((num_cores, 1, _LANES), jnp.float32),
        ),
        grid_spec=pltpu.PrefetchScalarGridSpec(
            num_scalar_prefetch=0,
            grid=(num_cores, tpc),
            in_specs=[in_spec, in_spec, in_spec],
            out_specs=[acc_spec, acc_spec, fl_spec, fl_spec, fl_spec],
        ),
        compiler_params=pltpu.CompilerParams(
            dimension_semantics=dims,
            vmem_limit_bytes=vmem_limit),
    )(q, p, n)


def margin_mse_splade_loss(emb_query, emb_pos, emb_neg, labels,
                           lambda_d=LAMBDA_D, lambda_q=LAMBDA_Q,
                           num_cores=None):
    B, D = emb_query.shape
    labels = labels.astype(jnp.float32)

    if num_cores is None:
        num_cores = _tensorcores_per_chip()
        core_parallel = num_cores > 1
    else:
        # Explicit override (used in tests): run the multi-slab path
        # sequentially on any chip.
        core_parallel = False

    try:
        sp_p, sn_p, fq_p, fp_p, fn_p = _splade_partials(
            emb_query, emb_pos, emb_neg,
            num_cores=num_cores, core_parallel=core_parallel)
    except Exception:
        if num_cores == 1:
            raise
        # Fallback if CORE_PARALLEL (or 2-core sharding) is unavailable.
        sp_p, sn_p, fq_p, fp_p, fn_p = _splade_partials(
            emb_query, emb_pos, emb_neg, num_cores=1, core_parallel=False)

    # Tiny JAX epilogue: final cross-core / cross-lane reductions + MSE.
    scores_pos = jnp.sum(sp_p, axis=(0, 2))            # (B,)
    scores_neg = jnp.sum(sn_p, axis=(0, 2))
    margin_pred = scores_pos - scores_neg
    mse = jnp.mean((margin_pred - labels) ** 2)        # nn.MSELoss default 'mean'
    inv_b2 = 1.0 / (B * B)                             # true batch size
    flops_q = jnp.sum(fq_p) * inv_b2
    flops_p = jnp.sum(fp_p) * inv_b2
    flops_n = jnp.sum(fn_p) * inv_b2
    return mse + lambda_d * (flops_p + flops_n) + lambda_q * flops_q


def _reference_loss(q, p, n, labels, lambda_d=LAMBDA_D, lambda_q=LAMBDA_Q):
    q = q.astype(jnp.float32)
    p = p.astype(jnp.float32)
    n = n.astype(jnp.float32)
    scores_pos = jnp.sum(q * p, axis=-1)
    scores_neg = jnp.sum(q * n, axis=-1)
    margin_pred = scores_pos - scores_neg
    mse = jnp.mean((margin_pred - labels.astype(jnp.float32)) ** 2)
    flops = lambda x: jnp.sum(jnp.mean(jnp.abs(x), axis=0) ** 2)
    return mse + lambda_d * (flops(p) + flops(n)) + lambda_q * flops(q)


def _make_inputs(key, b, v):
    kq, kp, kn, kl = jax.random.split(key, 4)
    # Synthetic SPLADE-style (non-negative, sparse-ish) sentence embeddings.
    q = jax.nn.relu(jax.random.normal(kq, (b, v), dtype=jnp.float32) - 0.5)
    p = jax.nn.relu(jax.random.normal(kp, (b, v), dtype=jnp.float32) - 0.5)
    n = jax.nn.relu(jax.random.normal(kn, (b, v), dtype=jnp.float32) - 0.5)
    l = jax.random.normal(kl, (b,), dtype=jnp.float32)
    return q, p, n, l


def _check(out, ref):
    assert jnp.allclose(out, ref, rtol=1e-4, atol=1e-5), (float(out), float(ref))


if __name__ == "__main__":
    k1, k2, k3 = jax.random.split(jax.random.PRNGKey(0), 3)

    # Case 1: deliberately awkward small shapes (B not a multiple of 8, V not a
    # multiple of 128) -> exercises the unpadded-inputs + ragged-tail mask path.
    q, p, n, l = _make_inputs(k1, 6, 300)
    out = jax.block_until_ready(margin_mse_splade_loss(q, p, n, l))
    _check(out, _reference_loss(q, p, n, l))

    # Case 2: multiple tiles, multiple 128-lane chunks per tile, ragged tail.
    q2, p2, n2, l2 = _make_inputs(k2, 10, 1500)
    out = jax.block_until_ready(margin_mse_splade_loss(q2, p2, n2, l2))
    _check(out, _reference_loss(q2, p2, n2, l2))

    # Case 3: force the two-core-slab path (duplicated tail tile gets clamped
    # + fully masked; runs sequentially on single-TensorCore chips).
    q3, p3, n3, l3 = _make_inputs(k3, 6, 300)
    out = jax.block_until_ready(margin_mse_splade_loss(q3, p3, n3, l3, num_cores=2))
    _check(out, _reference_loss(q3, p3, n3, l3))

    # Case 4: bf16 embeddings (half the HBM bytes); kernel upcasts per chunk.
    qb, pb, nb = (x.astype(jnp.bfloat16) for x in (q2, p2, n2))
    out = jax.block_until_ready(margin_mse_splade_loss(qb, pb, nb, l2))
    _check(out, _reference_loss(qb, pb, nb, l2))

    print("KERNEL_OK")
</pallas_src>

<mosaic_0001>
module attributes {stable_mosaic.version = 11 : i64} {
  func.func @_splade_partial_kernel(%arg0: i32, %arg1: i32, %arg2: memref<6x128xf32, #tpu.memory_space<vmem>>, %arg3: memref<6x128xf32, #tpu.memory_space<vmem>>, %arg4: memref<6x128xf32, #tpu.memory_space<vmem>>, %arg5: memref<1x6x128xf32, #tpu.memory_space<vmem>>, %arg6: memref<1x6x128xf32, #tpu.memory_space<vmem>>, %arg7: memref<1x1x128xf32, #tpu.memory_space<vmem>>, %arg8: memref<1x1x128xf32, #tpu.memory_space<vmem>>, %arg9: memref<1x1x128xf32, #tpu.memory_space<vmem>>) attributes {dimension_semantics = [#tpu.dimension_semantics<arbitrary>, #tpu.dimension_semantics<arbitrary>], iteration_bounds = array<i64: 1, 3>, scalar_prefetch = 0 : i64, scratch_operands = 0 : i64, tpu.core_type = #tpu.core_type<tc>, window_params = [{transform_indices = @transform_0, window_bounds = array<i64: 6, 128>}, {transform_indices = @transform_1, window_bounds = array<i64: 6, 128>}, {transform_indices = @transform_2, window_bounds = array<i64: 6, 128>}, {transform_indices = @transform_3, window_bounds = array<i64: 1, 6, 128>}, {transform_indices = @transform_4, window_bounds = array<i64: 1, 6, 128>}, {transform_indices = @transform_5, window_bounds = array<i64: 1, 1, 128>}, {transform_indices = @transform_6, window_bounds = array<i64: 1, 1, 128>}, {transform_indices = @transform_7, window_bounds = array<i64: 1, 1, 128>}]} {
    %c0_i32 = arith.constant 0 : i32
    %0 = arith.cmpi eq, %arg1, %c0_i32 : i32
    %1 = arith.extui %0 : i1 to i32
    %c0_i32_0 = arith.constant 0 : i32
    %2 = arith.cmpi ne, %1, %c0_i32_0 : i32
    scf.if %2 {
      %cst_47 = arith.constant 0.000000e+00 : f32
      %81 = vector.broadcast %cst_47 : f32 to vector<6x128xf32>
      %c0_48 = arith.constant 0 : index
      %c0_49 = arith.constant 0 : index
      %c0_50 = arith.constant 0 : index
      %82 = vector.load %arg5[%c0_48, %c0_49, %c0_50] : memref<1x6x128xf32, #tpu.memory_space<vmem>>, vector<1x6x128xf32>
      %83 = vector.shape_cast %82 : vector<1x6x128xf32> to vector<6x128xf32>
      %84 = vector.shape_cast %81 : vector<6x128xf32> to vector<1x6x128xf32>
      tpu.vector_store %arg5[%c0_48, %c0_49, %c0_50], %84 {strides = array<i32>} : memref<1x6x128xf32, #tpu.memory_space<vmem>>, vector<1x6x128xf32>,
      %cst_51 = arith.constant 0.000000e+00 : f32
      %85 = vector.broadcast %cst_51 : f32 to vector<6x128xf32>
      %c0_52 = arith.constant 0 : index
      %c0_53 = arith.constant 0 : index
      %c0_54 = arith.constant 0 : index
      %86 = vector.load %arg6[%c0_52, %c0_53, %c0_54] : memref<1x6x128xf32, #tpu.memory_space<vmem>>, vector<1x6x128xf32>
      %87 = vector.shape_cast %86 : vector<1x6x128xf32> to vector<6x128xf32>
      %88 = vector.shape_cast %85 : vector<6x128xf32> to vector<1x6x128xf32>
      tpu.vector_store %arg6[%c0_52, %c0_53, %c0_54], %88 {strides = array<i32>} : memref<1x6x128xf32, #tpu.memory_space<vmem>>, vector<1x6x128xf32>,
      %cst_55 = arith.constant 0.000000e+00 : f32
      %89 = vector.broadcast %cst_55 : f32 to vector<1x128xf32>
      %c0_56 = arith.constant 0 : index
      %c0_57 = arith.constant 0 : index
      %c0_58 = arith.constant 0 : index
      %90 = vector.load %arg7[%c0_56, %c0_57, %c0_58] : memref<1x1x128xf32, #tpu.memory_space<vmem>>, vector<1x1x128xf32>
      %91 = vector.shape_cast %90 : vector<1x1x128xf32> to vector<1x128xf32>
      %92 = vector.shape_cast %89 : vector<1x128xf32> to vector<1x1x128xf32>
      tpu.vector_store %arg7[%c0_56, %c0_57, %c0_58], %92 {strides = array<i32>} : memref<1x1x128xf32, #tpu.memory_space<vmem>>, vector<1x1x128xf32>,
      %cst_59 = arith.constant 0.000000e+00 : f32
      %93 = vector.broadcast %cst_59 : f32 to vector<1x128xf32>
      %c0_60 = arith.constant 0 : index
      %c0_61 = arith.constant 0 : index
      %c0_62 = arith.constant 0 : index
      %94 = vector.load %arg8[%c0_60, %c0_61, %c0_62] : memref<1x1x128xf32, #tpu.memory_space<vmem>>, vector<1x1x128xf32>
      %95 = vector.shape_cast %94 : vector<1x1x128xf32> to vector<1x128xf32>
      %96 = vector.shape_cast %93 : vector<1x128xf32> to vector<1x1x128xf32>
      tpu.vector_store %arg8[%c0_60, %c0_61, %c0_62], %96 {strides = array<i32>} : memref<1x1x128xf32, #tpu.memory_space<vmem>>, vector<1x1x128xf32>,
      %cst_63 = arith.constant 0.000000e+00 : f32
      %97 = vector.broadcast %cst_63 : f32 to vector<1x128xf32>
      %c0_64 = arith.constant 0 : index
      %c0_65 = arith.constant 0 : index
      %c0_66 = arith.constant 0 : index
      %98 = vector.load %arg9[%c0_64, %c0_65, %c0_66] : memref<1x1x128xf32, #tpu.memory_space<vmem>>, vector<1x1x128xf32>
      %99 = vector.shape_cast %98 : vector<1x1x128xf32> to vector<1x128xf32>
      %100 = vector.shape_cast %97 : vector<1x128xf32> to vector<1x1x128xf32>
      tpu.vector_store %arg9[%c0_64, %c0_65, %c0_66], %100 {strides = array<i32>} : memref<1x1x128xf32, #tpu.memory_space<vmem>>, vector<1x1x128xf32>,
    } else {
    }
    %cst = arith.constant 0.000000e+00 : f32
    %3 = vector.broadcast %cst : f32 to vector<1x128xf32>
    %cst_1 = arith.constant 0.000000e+00 : f32
    %4 = vector.broadcast %cst_1 : f32 to vector<1x128xf32>
    %cst_2 = arith.constant 0.000000e+00 : f32
    %5 = vector.broadcast %cst_2 : f32 to vector<1x128xf32>
    %cst_3 = arith.constant 0.000000e+00 : f32
    %6 = vector.broadcast %cst_3 : f32 to vector<6x128xf32>
    %cst_4 = arith.constant 0.000000e+00 : f32
    %7 = vector.broadcast %cst_4 : f32 to vector<6x128xf32>
    %c3_i32 = arith.constant 3 : i32
    %8 = arith.muli %arg0, %c3_i32 : i32
    %9 = arith.addi %8, %arg1 : i32
    %c128_i32 = arith.constant 128 : i32
    %10 = arith.muli %9, %c128_i32 : i32
    %11 = tpu.iota {dimensions = array<i32: 1>} : vector<1x128xi32>
    %c0 = arith.constant 0 : index
    %c0_5 = arith.constant 0 : index
    %12 = vector.load %arg2[%c0, %c0_5] : memref<6x128xf32, #tpu.memory_space<vmem>>, vector<6x128xf32>
    %c0_6 = arith.constant 0 : index
    %c0_7 = arith.constant 0 : index
    %13 = vector.load %arg3[%c0_6, %c0_7] : memref<6x128xf32, #tpu.memory_space<vmem>>, vector<6x128xf32>
    %c0_8 = arith.constant 0 : index
    %c0_9 = arith.constant 0 : index
    %14 = vector.load %arg4[%c0_8, %c0_9] : memref<6x128xf32, #tpu.memory_space<vmem>>, vector<6x128xf32>
    %c0_i32_10 = arith.constant 0 : i32
    %15 = arith.addi %10, %c0_i32_10 : i32
    %16 = vector.broadcast %15 : i32 to vector<1x128xi32>
    %17 = arith.addi %11, %16 : vector<1x128xi32>
    %c300_i32 = arith.constant 300 : i32
    %18 = vector.broadcast %c300_i32 : i32 to vector<1x128xi32>
    %19 = arith.cmpi slt, %17, %18 : vector<1x128xi32>
    %cst_11 = arith.constant 0.000000e+00 : f32
    %20 = vector.shape_cast %19 : vector<1x128xi1> to vector<1x128xi1>
    %21 = vector.broadcast %20 : vector<1x128xi1> to vector<6x128xi1>
    %22 = vector.broadcast %cst_11 : f32 to vector<6x128xf32>
    %23 = arith.select %21, %12, %22 : vector<6x128xi1>, vector<6x128xf32>
    %cst_12 = arith.constant 0.000000e+00 : f32
    %24 = vector.shape_cast %19 : vector<1x128xi1> to vector<1x128xi1>
    %25 = vector.broadcast %24 : vector<1x128xi1> to vector<6x128xi1>
    %26 = vector.broadcast %cst_12 : f32 to vector<6x128xf32>
    %27 = arith.select %25, %13, %26 : vector<6x128xi1>, vector<6x128xf32>
    %cst_13 = arith.constant 0.000000e+00 : f32
    %28 = vector.shape_cast %19 : vector<1x128xi1> to vector<1x128xi1>
    %29 = vector.broadcast %28 : vector<1x128xi1> to vector<6x128xi1>
    %30 = vector.broadcast %cst_13 : f32 to vector<6x128xf32>
    %31 = arith.select %29, %14, %30 : vector<6x128xi1>, vector<6x128xf32>
    %32 = arith.mulf %23, %27 : vector<6x128xf32>
    %33 = arith.mulf %23, %31 : vector<6x128xf32>
    %34 = arith.addf %6, %32 : vector<6x128xf32>
    %35 = arith.addf %7, %33 : vector<6x128xf32>
    %36 = math.absf %23 : vector<6x128xf32>
    %cst_14 = arith.constant dense<0.000000e+00> : vector<128xf32>
    %37 = vector.multi_reduction <add>, %36, %cst_14 [0] : vector<6x128xf32> to vector<128xf32>
    %38 = vector.shape_cast %37 : vector<128xf32> to vector<1x128xf32>
    %39 = math.absf %27 : vector<6x128xf32>
    %cst_15 = arith.constant dense<0.000000e+00> : vector<128xf32>
    %40 = vector.multi_reduction <add>, %39, %cst_15 [0] : vector<6x128xf32> to vector<128xf32>
    %41 = vector.shape_cast %40 : vector<128xf32> to vector<1x128xf32>
    %42 = math.absf %31 : vector<6x128xf32>
    %cst_16 = arith.constant dense<0.000000e+00> : vector<128xf32>
    %43 = vector.multi_reduction <add>, %42, %cst_16 [0] : vector<6x128xf32> to vector<128xf32>
    %44 = vector.shape_cast %43 : vector<128xf32> to vector<1x128xf32>
    %45 = arith.mulf %38, %38 : vector<1x128xf32>
    %46 = arith.addf %3, %45 : vector<1x128xf32>
    %47 = arith.mulf %41, %41 : vector<1x128xf32>
    %48 = arith.addf %4, %47 : vector<1x128xf32>
    %49 = arith.mulf %44, %44 : vector<1x128xf32>
    %50 = arith.addf %5, %49 : vector<1x128xf32>
    %c0_17 = arith.constant 0 : index
    %c0_18 = arith.constant 0 : index
    %c0_19 = arith.constant 0 : index
    %51 = vector.load %arg5[%c0_17, %c0_18, %c0_19] : memref<1x6x128xf32, #tpu.memory_space<vmem>>, vector<1x6x128xf32>
    %52 = vector.shape_cast %51 : vector<1x6x128xf32> to vector<6x128xf32>
    %53 = arith.addf %52, %34 : vector<6x128xf32>
    %c0_20 = arith.constant 0 : index
    %c0_21 = arith.constant 0 : index
    %c0_22 = arith.constant 0 : index
    %54 = vector.load %arg5[%c0_20, %c0_21, %c0_22] : memref<1x6x128xf32, #tpu.memory_space<vmem>>, vector<1x6x128xf32>
    %55 = vector.shape_cast %54 : vector<1x6x128xf32> to vector<6x128xf32>
    %56 = vector.shape_cast %53 : vector<6x128xf32> to vector<1x6x128xf32>
    tpu.vector_store %arg5[%c0_20, %c0_21, %c0_22], %56 {strides = array<i32>} : memref<1x6x128xf32, #tpu.memory_space<vmem>>, vector<1x6x128xf32>,
    %c0_23 = arith.constant 0 : index
    %c0_24 = arith.constant 0 : index
    %c0_25 = arith.constant 0 : index
    %57 = vector.load %arg6[%c0_23, %c0_24, %c0_25] : memref<1x6x128xf32, #tpu.memory_space<vmem>>, vector<1x6x128xf32>
    %58 = vector.shape_cast %57 : vector<1x6x128xf32> to vector<6x128xf32>
    %59 = arith.addf %58, %35 : vector<6x128xf32>
    %c0_26 = arith.constant 0 : index
    %c0_27 = arith.constant 0 : index
    %c0_28 = arith.constant 0 : index
    %60 = vector.load %arg6[%c0_26, %c0_27, %c0_28] : memref<1x6x128xf32, #tpu.memory_space<vmem>>, vector<1x6x128xf32>
    %61 = vector.shape_cast %60 : vector<1x6x128xf32> to vector<6x128xf32>
    %62 = vector.shape_cast %59 : vector<6x128xf32> to vector<1x6x128xf32>
    tpu.vector_store %arg6[%c0_26, %c0_27, %c0_28], %62 {strides = array<i32>} : memref<1x6x128xf32, #tpu.memory_space<vmem>>, vector<1x6x128xf32>,
    %c0_29 = arith.constant 0 : index
    %c0_30 = arith.constant 0 : index
    %c0_31 = arith.constant 0 : index
    %63 = vector.load %arg7[%c0_29, %c0_30, %c0_31] : memref<1x1x128xf32, #tpu.memory_space<vmem>>, vector<1x1x128xf32>
    %64 = vector.shape_cast %63 : vector<1x1x128xf32> to vector<1x128xf32>
    %65 = arith.addf %64, %46 : vector<1x128xf32>
    %c0_32 = arith.constant 0 : index
    %c0_33 = arith.constant 0 : index
    %c0_34 = arith.constant 0 : index
    %66 = vector.load %arg7[%c0_32, %c0_33, %c0_34] : memref<1x1x128xf32, #tpu.memory_space<vmem>>, vector<1x1x128xf32>
    %67 = vector.shape_cast %66 : vector<1x1x128xf32> to vector<1x128xf32>
    %68 = vector.shape_cast %65 : vector<1x128xf32> to vector<1x1x128xf32>
    tpu.vector_store %arg7[%c0_32, %c0_33, %c0_34], %68 {strides = array<i32>} : memref<1x1x128xf32, #tpu.memory_space<vmem>>, vector<1x1x128xf32>,
    %c0_35 = arith.constant 0 : index
    %c0_36 = arith.constant 0 : index
    %c0_37 = arith.constant 0 : index
    %69 = vector.load %arg8[%c0_35, %c0_36, %c0_37] : memref<1x1x128xf32, #tpu.memory_space<vmem>>, vector<1x1x128xf32>
    %70 = vector.shape_cast %69 : vector<1x1x128xf32> to vector<1x128xf32>
    %71 = arith.addf %70, %48 : vector<1x128xf32>
    %c0_38 = arith.constant 0 : index
    %c0_39 = arith.constant 0 : index
    %c0_40 = arith.constant 0 : index
    %72 = vector.load %arg8[%c0_38, %c0_39, %c0_40] : memref<1x1x128xf32, #tpu.memory_space<vmem>>, vector<1x1x128xf32>
    %73 = vector.shape_cast %72 : vector<1x1x128xf32> to vector<1x128xf32>
    %74 = vector.shape_cast %71 : vector<1x128xf32> to vector<1x1x128xf32>
    tpu.vector_store %arg8[%c0_38, %c0_39, %c0_40], %74 {strides = array<i32>} : memref<1x1x128xf32, #tpu.memory_space<vmem>>, vector<1x1x128xf32>,
    %c0_41 = arith.constant 0 : index
    %c0_42 = arith.constant 0 : index
    %c0_43 = arith.constant 0 : index
    %75 = vector.load %arg9[%c0_41, %c0_42, %c0_43] : memref<1x1x128xf32, #tpu.memory_space<vmem>>, vector<1x1x128xf32>
    %76 = vector.shape_cast %75 : vector<1x1x128xf32> to vector<1x128xf32>
    %77 = arith.addf %76, %50 : vector<1x128xf32>
    %c0_44 = arith.constant 0 : index
    %c0_45 = arith.constant 0 : index
    %c0_46 = arith.constant 0 : index
    %78 = vector.load %arg9[%c0_44, %c0_45, %c0_46] : memref<1x1x128xf32, #tpu.memory_space<vmem>>, vector<1x1x128xf32>
    %79 = vector.shape_cast %78 : vector<1x1x128xf32> to vector<1x128xf32>
    %80 = vector.shape_cast %77 : vector<1x128xf32> to vector<1x1x128xf32>
    tpu.vector_store %arg9[%c0_44, %c0_45, %c0_46], %80 {strides = array<i32>} : memref<1x1x128xf32, #tpu.memory_space<vmem>>, vector<1x1x128xf32>,
    return
  }
  func.func @transform_0(%arg0: i32, %arg1: i32) -> (i32, i32) {
    %c3_i32 = arith.constant 3 : i32
    %0 = arith.muli %arg0, %c3_i32 : i32
    %1 = arith.addi %0, %arg1 : i32
    %c2_i32 = arith.constant 2 : i32
    %2 = arith.minsi %1, %c2_i32 : i32
    %c0_i32 = arith.constant 0 : i32
    %c0_i32_0 = arith.constant 0 : i32
    return %c0_i32, %2 : i32, i32
  }
  func.func @transform_1(%arg0: i32, %arg1: i32) -> (i32, i32) {
    %c3_i32 = arith.constant 3 : i32
    %0 = arith.muli %arg0, %c3_i32 : i32
    %1 = arith.addi %0, %arg1 : i32
    %c2_i32 = arith.constant 2 : i32
    %2 = arith.minsi %1, %c2_i32 : i32
    %c0_i32 = arith.constant 0 : i32
    %c0_i32_0 = arith.constant 0 : i32
    return %c0_i32, %2 : i32, i32
  }
  func.func @transform_2(%arg0: i32, %arg1: i32) -> (i32, i32) {
    %c3_i32 = arith.constant 3 : i32
    %0 = arith.muli %arg0, %c3_i32 : i32
    %1 = arith.addi %0, %arg1 : i32
    %c2_i32 = arith.constant 2 : i32
    %2 = arith.minsi %1, %c2_i32 : i32
    %c0_i32 = arith.constant 0 : i32
    %c0_i32_0 = arith.constant 0 : i32
    return %c0_i32, %2 : i32, i32
  }
  func.func @transform_3(%arg0: i32, %arg1: i32) -> (i32, i32, i32) {
    %c0_i32 = arith.constant 0 : i32
    %c0_i32_0 = arith.constant 0 : i32
    %c0_i32_1 = arith.constant 0 : i32
    return %arg0, %c0_i32, %c0_i32_0 : i32, i32, i32
  }
  func.func @transform_4(%arg0: i32, %arg1: i32) -> (i32, i32, i32) {
    %c0_i32 = arith.constant 0 : i32
    %c0_i32_0 = arith.constant 0 : i32
    %c0_i32_1 = arith.constant 0 : i32
    return %arg0, %c0_i32, %c0_i32_0 : i32, i32, i32
  }
  func.func @transform_5(%arg0: i32, %arg1: i32) -> (i32, i32, i32) {
    %c0_i32 = arith.constant 0 : i32
    %c0_i32_0 = arith.constant 0 : i32
    %c0_i32_1 = arith.constant 0 : i32
    return %arg0, %c0_i32, %c0_i32_0 : i32, i32, i32
  }
  func.func @transform_6(%arg0: i32, %arg1: i32) -> (i32, i32, i32) {
    %c0_i32 = arith.constant 0 : i32
    %c0_i32_0 = arith.constant 0 : i32
    %c0_i32_1 = arith.constant 0 : i32
    return %arg0, %c0_i32, %c0_i32_0 : i32, i32, i32
  }
  func.func @transform_7(%arg0: i32, %arg1: i32) -> (i32, i32, i32) {
    %c0_i32 = arith.constant 0 : i32
    %c0_i32_0 = arith.constant 0 : i32
    %c0_i32_1 = arith.constant 0 : i32
    return %arg0, %c0_i32, %c0_i32_0 : i32, i32, i32
  }
}

</mosaic_0001>

<llo_original>
// kernel: tpu_custom_call.1
$region0: #{tpu_custom_call.1}
  #allocation0 [shape = 'u32[]', space=smem, size = 0x4, offset = 0x4, fixed_abs, tag = 'smem constant byte address 0x4 - core index']
  #allocation1 [shape = 'u32[144,128]{1,0:T(1,128)}', space=vmem, size = 0x12000, scoped, tag = 'internal scratch']
  %s0 = inlined_call_operand.hbm [shape: f32[6,300], index: 0, kind: input, shape index: {}]
  %s1 = inlined_call_operand.hbm [shape: f32[6,300], index: 1, kind: input, shape index: {}]
  %s2 = inlined_call_operand.hbm [shape: f32[6,300], index: 2, kind: input, shape index: {}]
  %s3 = inlined_call_operand.vmem [shape: f32[1,6,128], index: 3, kind: output, shape index: {0}]
  %s4 = inlined_call_operand.vmem [shape: f32[1,6,128], index: 4, kind: output, shape index: {1}]
  %s5 = inlined_call_operand.hbm [shape: f32[1,1,128], index: 5, kind: output, shape index: {2}]
  %s6 = inlined_call_operand.hbm [shape: f32[1,1,128], index: 6, kind: output, shape index: {3}]
  %s7 = inlined_call_operand.hbm [shape: f32[1,1,128], index: 7, kind: output, shape index: {4}]
  %8 = xla_tuple %s3, %s4, %s5, %s6, %s7
  %s9 = sld [smem:[#allocation0]]
  $region93: #{tpu_custom_call.1} parent=0
    _
  %s11 = ssub.s32 1, %s9
  %s12 = scalar_select 0, %s11, %s9
  $region1: #{tpu_custom_call.1} parent=0
    #allocation2 [shape = 'u8[8192]{0}', space=vmem, size = 0x2000, scoped, tag = 'input window, operand 0']
    #allocation3 [shape = 's32[2]{0}', space=sflag, size = 0x8, scoped, tag = 'scoped memory for tpu_custom_call.1']
    #allocation4 [shape = 's32[2]{0}', space=sflag, size = 0x8, scoped, tag = 'scoped memory for tpu_custom_call.1']
    #allocation5 [shape = 'u8[8192]{0}', space=vmem, size = 0x2000, scoped, tag = 'input window, operand 1']
    #allocation6 [shape = 's32[2]{0}', space=sflag, size = 0x8, scoped, tag = 'scoped memory for tpu_custom_call.1']
    #allocation7 [shape = 'u8[8192]{0}', space=vmem, size = 0x2000, scoped, tag = 'input window, operand 2']
    #allocation8 [shape = 'u8[512]{0}', space=vmem, size = 0x400, scoped, tag = 'output window, operand 2, single buffered']
    #allocation9 [shape = 'u8[512]{0}', space=vmem, size = 0x400, scoped, tag = 'output window, operand 3, single buffered']
    #allocation10 [shape = 's32[1]{0}', space=sflag, size = 0x4, scoped, tag = 'scoped memory for tpu_custom_call.1']
    #allocation11 [shape = 'u8[512]{0}', space=vmem, size = 0x400, scoped, tag = 'output window, operand 4, single buffered']
    %13 = vsyncpa [#allocation3], 0
    %s14 = scalar_lea.sflag [#allocation3], 1
    %15 = vsyncpa %s14, 0
    %16 = vsyncpa [#allocation6], 0
    %s17 = scalar_lea.sflag [#allocation6], 1
    %18 = vsyncpa %s17, 0
    %19 = vsyncpa [#allocation4], 0
    %20 = vsyncpa [#allocation10], 0
    loop: start=0, step=1, limit=5
    $region2: #{tpu_custom_call.1} parent=1 // loop_pre_header
      _
    $region3: #{tpu_custom_call.1} parent=1 // loop_header
      %s22 = sphi 0, %s26
      %p23 = scmp.ge.s32.totalorder %s22, 5
      %s29 = sphi 0, %s41
      %s30 = sphi 0, %s37
      %s31 = sphi 0, %s29
      %s32 = sphi 0, %s30
      %s33 = sphi 0, %s31
      %s34 = sphi 0, %s32
      %s52 = sphi 0, %s54
      %s55 = sphi 0, %s52
      %s56 = sphi 0, %s55
      %s72 = sphi 0, %s56
      %s86 = sphi 0, %s88
      %s89 = sphi 0, %s86
      %s90 = sphi 0, %s89
      %s106 = sphi 0, %s90
      %s120 = sphi 0, %s122
      %s123 = sphi 0, %s120
      %s124 = sphi 0, %s123
      %s140 = sphi 0, %s124
      %s146 = sphi 0, %s148
      %s149 = sphi 0, %s146
      %s150 = sphi 0, %s149
      %s166 = sphi 0, %s150
      %s172 = sphi 0, %s174
      %s175 = sphi 0, %s172
      %s176 = sphi 0, %s175
      %s192 = sphi 0, %s176
      %s198 = sphi 0, %s200
      %s201 = sphi 0, %s198
      %s202 = sphi 0, %s201
      %s218 = sphi 0, %s202
      %s224 = sphi 0, %s226
      %s227 = sphi 0, %s224
      %s228 = sphi 0, %s227
      %s244 = sphi 0, %s228
      %s250 = sphi 0, %s252
      %s253 = sphi 0, %s250
      %s254 = sphi 0, %s253
      %s270 = sphi 0, %s254
    $region4: #{tpu_custom_call.1} parent=1 // loop_header_branch
      %25 = sbr.rel (%p23) target = $region8
    $region5: #{tpu_custom_call.1} parent=1 // loop_body
      %s27 = ssub.s32 %s22, 1
      %s28 = ssub.s32 %s22, 2
      %s35 = sadd.s32 1, %s30
      %p36 = scmp.ge.s32.totalorder %s35, 3
      %s37 = scalar_select %p36, 0, %s35
      %s38 = sadd.s32 1, %s29
      %s39 = scalar_select %p36, %s38, %s29
      %p40 = scmp.ge.s32.totalorder %s39, 1
      %s41 = scalar_select %p40, 0, %s39
      %s42 = smul.u32 %s29, 3
      %s43 = sadd.s32 %s42, %s30
      %p44 = scmp.lt.s32.totalorder %s43, 2
      %s45 = scalar_select %p44, %s43, 2
      %s46 = smul.u32 %s41, 3
      %s47 = sadd.s32 %s46, %s37
      %p48 = scmp.lt.s32.totalorder %s47, 2
      %s49 = scalar_select %p48, %s47, 2
      %s50 = ssub.s32 %s45, %s49
      %p51 = scmp.eq.s32.totalorder %s50, 0
      %s53 = sadd.s32 %s52, 1
      %s54 = scalar_select %p51, %s52, %s53
      %p57 = pneg %p51
      %p58 = scmp.eq.s32.totalorder %s22, 2
      %p59 = por %p57, %p58
      %p60 = scmp.ne.s32.totalorder %s52, %s55
      %p61 = scmp.eq.s32.totalorder %s22, 0
      %p62 = por %p60, %p61
      %p63 = scmp.ne.s32.totalorder %s52, %s55
      %p64 = scmp.eq.s32.totalorder %s27, 2
      %p65 = por %p63, %p64
      %p66 = scmp.ne.s32.totalorder %s55, %s56
      %p67 = scmp.eq.s32.totalorder %s27, 0
      %p68 = por %p66, %p67
      %p69 = scmp.ne.s32.totalorder %s55, %s56
      %p70 = scmp.eq.s32.totalorder %s28, 2
      %p71 = por %p69, %p70
      %p73 = scmp.ne.s32.totalorder %s56, %s72
      %p74 = scmp.eq.s32.totalorder %s28, 0
      %p75 = por %p73, %p74
      %s76 = smul.u32 %s29, 3
      %s77 = sadd.s32 %s76, %s30
      %p78 = scmp.lt.s32.totalorder %s77, 2
      %s79 = scalar_select %p78, %s77, 2
      %s80 = smul.u32 %s41, 3
      %s81 = sadd.s32 %s80, %s37
      %p82 = scmp.lt.s32.totalorder %s81, 2
      %s83 = scalar_select %p82, %s81, 2
      %s84 = ssub.s32 %s79, %s83
      %p85 = scmp.eq.s32.totalorder %s84, 0
      %s87 = sadd.s32 %s86, 1
      %s88 = scalar_select %p85, %s86, %s87
      %p91 = pneg %p85
      %p92 = scmp.eq.s32.totalorder %s22, 2
      %p93 = por %p91, %p92
      %p94 = scmp.ne.s32.totalorder %s86, %s89
      %p95 = scmp.eq.s32.totalorder %s22, 0
      %p96 = por %p94, %p95
      %p97 = scmp.ne.s32.totalorder %s86, %s89
      %p98 = scmp.eq.s32.totalorder %s27, 2
      %p99 = por %p97, %p98
      %p100 = scmp.ne.s32.totalorder %s89, %s90
      %p101 = scmp.eq.s32.totalorder %s27, 0
      %p102 = por %p100, %p101
      %p103 = scmp.ne.s32.totalorder %s89, %s90
      %p104 = scmp.eq.s32.totalorder %s28, 2
      %p105 = por %p103, %p104
      %p107 = scmp.ne.s32.totalorder %s90, %s106
      %p108 = scmp.eq.s32.totalorder %s28, 0
      %p109 = por %p107, %p108
      %s110 = smul.u32 %s29, 3
      %s111 = sadd.s32 %s110, %s30
      %p112 = scmp.lt.s32.totalorder %s111, 2
      %s113 = scalar_select %p112, %s111, 2
      %s114 = smul.u32 %s41, 3
      %s115 = sadd.s32 %s114, %s37
      %p116 = scmp.lt.s32.totalorder %s115, 2
      %s117 = scalar_select %p116, %s115, 2
      %s118 = ssub.s32 %s113, %s117
      %p119 = scmp.eq.s32.totalorder %s118, 0
      %s121 = sadd.s32 %s120, 1
      %s122 = scalar_select %p119, %s120, %s121
      %p125 = pneg %p119
      %p126 = scmp.eq.s32.totalorder %s22, 2
      %p127 = por %p125, %p126
      %p128 = scmp.ne.s32.totalorder %s120, %s123
      %p129 = scmp.eq.s32.totalorder %s22, 0
      %p130 = por %p128, %p129
      %p131 = scmp.ne.s32.totalorder %s120, %s123
      %p132 = scmp.eq.s32.totalorder %s27, 2
      %p133 = por %p131, %p132
      %p134 = scmp.ne.s32.totalorder %s123, %s124
      %p135 = scmp.eq.s32.totalorder %s27, 0
      %p136 = por %p134, %p135
      %p137 = scmp.ne.s32.totalorder %s123, %s124
      %p138 = scmp.eq.s32.totalorder %s28, 2
      %p139 = por %p137, %p138
      %p141 = scmp.ne.s32.totalorder %s124, %s140
      %p142 = scmp.eq.s32.totalorder %s28, 0
      %p143 = por %p141, %p142
      %s144 = ssub.s32 %s29, %s41
      %p145 = scmp.eq.s32.totalorder %s144, 0
      %s147 = sadd.s32 %s146, 1
      %s148 = scalar_select %p145, %s146, %s147
      %p151 = pneg %p145
      %p152 = scmp.eq.s32.totalorder %s22, 2
      %p153 = por %p151, %p152
      %p154 = scmp.ne.s32.totalorder %s146, %s149
      %p155 = scmp.eq.s32.totalorder %s22, 0
      %p156 = por %p154, %p155
      %p157 = scmp.ne.s32.totalorder %s146, %s149
      %p158 = scmp.eq.s32.totalorder %s27, 2
      %p159 = por %p157, %p158
      %p160 = scmp.ne.s32.totalorder %s149, %s150
      %p161 = scmp.eq.s32.totalorder %s27, 0
      %p162 = por %p160, %p161
      %p163 = scmp.ne.s32.totalorder %s149, %s150
      %p164 = scmp.eq.s32.totalorder %s28, 2
      %p165 = por %p163, %p164
      %p167 = scmp.ne.s32.totalorder %s150, %s166
      %p168 = scmp.eq.s32.totalorder %s28, 0
      %p169 = por %p167, %p168
      %s170 = ssub.s32 %s29, %s41
      %p171 = scmp.eq.s32.totalorder %s170, 0
      %s173 = sadd.s32 %s172, 1
      %s174 = scalar_select %p171, %s172, %s173
      %p177 = pneg %p171
      %p178 = scmp.eq.s32.totalorder %s22, 2
      %p179 = por %p177, %p178
      %p180 = scmp.ne.s32.totalorder %s172, %s175
      %p181 = scmp.eq.s32.totalorder %s22, 0
      %p182 = por %p180, %p181
      %p183 = scmp.ne.s32.totalorder %s172, %s175
      %p184 = scmp.eq.s32.totalorder %s27, 2
      %p185 = por %p183, %p184
      %p186 = scmp.ne.s32.totalorder %s175, %s176
      %p187 = scmp.eq.s32.totalorder %s27, 0
      %p188 = por %p186, %p187
      %p189 = scmp.ne.s32.totalorder %s175, %s176
      %p190 = scmp.eq.s32.totalorder %s28, 2
      %p191 = por %p189, %p190
      %p193 = scmp.ne.s32.totalorder %s176, %s192
      %p194 = scmp.eq.s32.totalorder %s28, 0
      %p195 = por %p193, %p194
      %s196 = ssub.s32 %s29, %s41
      %p197 = scmp.eq.s32.totalorder %s196, 0
      %s199 = sadd.s32 %s198, 1
      %s200 = scalar_select %p197, %s198, %s199
      %p203 = pneg %p197
      %p204 = scmp.eq.s32.totalorder %s22, 2
      %p205 = por %p203, %p204
      %p206 = scmp.ne.s32.totalorder %s198, %s201
      %p207 = scmp.eq.s32.totalorder %s22, 0
      %p208 = por %p206, %p207
      %p209 = scmp.ne.s32.totalorder %s198, %s201
      %p210 = scmp.eq.s32.totalorder %s27, 2
      %p211 = por %p209, %p210
      %p212 = scmp.ne.s32.totalorder %s201, %s202
      %p213 = scmp.eq.s32.totalorder %s27, 0
      %p214 = por %p212, %p213
      %p215 = scmp.ne.s32.totalorder %s201, %s202
      %p216 = scmp.eq.s32.totalorder %s28, 2
      %p217 = por %p215, %p216
      %p219 = scmp.ne.s32.totalorder %s202, %s218
      %p220 = scmp.eq.s32.totalorder %s28, 0
      %p221 = por %p219, %p220
      %s222 = ssub.s32 %s29, %s41
      %p223 = scmp.eq.s32.totalorder %s222, 0
      %s225 = sadd.s32 %s224, 1
      %s226 = scalar_select %p223, %s224, %s225
      %p229 = pneg %p223
      %p230 = scmp.eq.s32.totalorder %s22, 2
      %p231 = por %p229, %p230
      %p232 = scmp.ne.s32.totalorder %s224, %s227
      %p233 = scmp.eq.s32.totalorder %s22, 0
      %p234 = por %p232, %p233
      %p235 = scmp.ne.s32.totalorder %s224, %s227
      %p236 = scmp.eq.s32.totalorder %s27, 2
      %p237 = por %p235, %p236
      %p238 = scmp.ne.s32.totalorder %s227, %s228
      %p239 = scmp.eq.s32.totalorder %s27, 0
      %p240 = por %p238, %p239
      %p241 = scmp.ne.s32.totalorder %s227, %s228
      %p242 = scmp.eq.s32.totalorder %s28, 2
      %p243 = por %p241, %p242
      %p245 = scmp.ne.s32.totalorder %s228, %s244
      %p246 = scmp.eq.s32.totalorder %s28, 0
      %p247 = por %p245, %p246
      %s248 = ssub.s32 %s29, %s41
      %p249 = scmp.eq.s32.totalorder %s248, 0
      %s251 = sadd.s32 %s250, 1
      %s252 = scalar_select %p249, %s250, %s251
      %p255 = pneg %p249
      %p256 = scmp.eq.s32.totalorder %s22, 2
      %p257 = por %p255, %p256
      %p258 = scmp.ne.s32.totalorder %s250, %s253
      %p259 = scmp.eq.s32.totalorder %s22, 0
      %p260 = por %p258, %p259
      %p261 = scmp.ne.s32.totalorder %s250, %s253
      %p262 = scmp.eq.s32.totalorder %s27, 2
      %p263 = por %p261, %p262
      %p264 = scmp.ne.s32.totalorder %s253, %s254
      %p265 = scmp.eq.s32.totalorder %s27, 0
      %p266 = por %p264, %p265
      %p267 = scmp.ne.s32.totalorder %s253, %s254
      %p268 = scmp.eq.s32.totalorder %s28, 2
      %p269 = por %p267, %p268
      %p271 = scmp.ne.s32.totalorder %s254, %s270
      %p272 = scmp.eq.s32.totalorder %s28, 0
      %p273 = por %p271, %p272
      %p274 = scmp.le.s32.totalorder 1, %s22
      %p275 = scmp.lt.s32.totalorder %s22, 4
      %p276 = pnand %p274, %p275
      %p277 = pneg %p276
      // Predicated region
      $region9: #{tpu_custom_call.1} parent=5 // pred_check
        _
      $region10: #{tpu_custom_call.1} parent=5 // pred_check_branch
        %279 = sbr.rel (%p276) target = $region12
      $region11: #{tpu_custom_call.1} parent=5 // pred_region
        %s280 = ssub.s32 %s22, 1
      $region12: #{tpu_custom_call.1} parent=5 // pred_fallthru
        _
      %p281 = scmp.lt.s32.totalorder %s22, 3
      // Predicated region
      $region13: #{tpu_custom_call.1} parent=5 // pred_check
        %p282 = pneg %p281
      $region14: #{tpu_custom_call.1} parent=5 // pred_check_branch
        %284 = sbr.rel (%p282) target = $region16
      $region15: #{tpu_custom_call.1} parent=5 // pred_region
        // Predicated region
        $region17: #{tpu_custom_call.1} parent=15 // pred_check
          %p285 = pneg %p62
        $region18: #{tpu_custom_call.1} parent=15 // pred_check_branch
          %287 = sbr.rel (%p285) target = $region20
        $region19: #{tpu_custom_call.1} parent=15 // pred_region
          %s288 = sand.u32 %s52, 1
          %s289 = scalar_lea.sflag [#allocation3], %s288
          %s290 = sand.u32 %s52, 1
          %s291 = smul.addr %s290, 8
          %s292 = scalar_lea.vmem [#allocation2], %s291
          %s293 = smul.u32 %s29, 3
          %s294 = sadd.s32 %s293, %s30
          %p295 = scmp.lt.s32.totalorder %s294, 2
          %s296 = scalar_select %p295, %s294, 2
          %s298 = ssub.s32 128, 128
          %299 = vsyncadd %s289, %s298
          %s300 = smul.addr %s296, 128
          %s301 = scalar_lea.hbm %s0, %s300
          %s303 = sshll.u32 %s292, 4
          %s304 = int_to_ptr.vmem [resolvable:$true] %s303
          %306 = dma.hbm_to_vmem [thread:$0]  %s301, 128, %s304, %s289
        $region20: #{tpu_custom_call.1} parent=15 // pred_fallthru
          _
        // Predicated region
        $region21: #{tpu_custom_call.1} parent=15 // pred_check
          %p307 = pneg %p96
        $region22: #{tpu_custom_call.1} parent=15 // pred_check_branch
          %309 = sbr.rel (%p307) target = $region24
        $region23: #{tpu_custom_call.1} parent=15 // pred_region
          %s310 = sand.u32 %s22, 1
          %s311 = scalar_lea.sflag [#allocation6], %s310
          %s312 = sand.u32 %s86, 1
          %s313 = smul.addr %s312, 8
          %s314 = scalar_lea.vmem [#allocation5], %s313
          %s315 = smul.u32 %s29, 3
          %s316 = sadd.s32 %s315, %s30
          %p317 = scmp.lt.s32.totalorder %s316, 2
          %s318 = scalar_select %p317, %s316, 2
          %s320 = ssub.s32 128, 128
          %321 = vsyncadd %s311, %s320
          %s322 = smul.addr %s318, 128
          %s323 = scalar_lea.hbm %s1, %s322
          %s325 = sshll.u32 %s314, 4
          %s326 = int_to_ptr.vmem [resolvable:$true] %s325
          %328 = dma.hbm_to_vmem [thread:$0]  %s323, 128, %s326, %s311
        $region24: #{tpu_custom_call.1} parent=15 // pred_fallthru
          _
        // Predicated region
        $region25: #{tpu_custom_call.1} parent=15 // pred_check
          %p329 = pneg %p130
        $region26: #{tpu_custom_call.1} parent=15 // pred_check_branch
          %331 = sbr.rel (%p329) target = $region28
        $region27: #{tpu_custom_call.1} parent=15 // pred_region
          %s332 = sand.u32 %s22, 1
          %s333 = scalar_lea.sflag [#allocation6], %s332
          %s334 = sand.u32 %s120, 1
          %s335 = smul.addr %s334, 8
          %s336 = scalar_lea.vmem [#allocation7], %s335
          %s337 = smul.u32 %s29, 3
          %s338 = sadd.s32 %s337, %s30
          %p339 = scmp.lt.s32.totalorder %s338, 2
          %s340 = scalar_select %p339, %s338, 2
          %s342 = ssub.s32 128, 128
          %343 = vsyncadd %s333, %s342
          %s344 = smul.addr %s340, 128
          %s345 = scalar_lea.hbm %s2, %s344
          %s347 = sshll.u32 %s336, 4
          %s348 = int_to_ptr.vmem [resolvable:$true] %s347
          %350 = dma.hbm_to_vmem [thread:$0]  %s345, 128, %s348, %s333
        $region28: #{tpu_custom_call.1} parent=15 // pred_fallthru
          _
      $region16: #{tpu_custom_call.1} parent=5 // pred_fallthru
        _
      %p351 = scmp.le.s32.totalorder 1, %s22
      %p352 = scmp.lt.s32.totalorder %s22, 4
      %p353 = pnand %p351, %p352
      %p354 = pneg %p353
      // Predicated region
      $region29: #{tpu_custom_call.1} parent=5 // pred_check
        _
      $region30: #{tpu_custom_call.1} parent=5 // pred_check_branch
        %356 = sbr.rel (%p353) target = $region32
      $region31: #{tpu_custom_call.1} parent=5 // pred_region
        %s357 = ssub.s32 %s22, 1
        %s358 = sand.u32 %s55, 1
        %s359 = scalar_lea.sflag [#allocation3], %s358
        %s360 = sand.u32 %s55, 1
        %s361 = smul.addr %s360, 8
        %s362 = scalar_lea.vmem [#allocation2], %s361
        // Predicated region
        $region33: #{tpu_custom_call.1} parent=31 // pred_check
          %p363 = pneg %p68
        $region34: #{tpu_custom_call.1} parent=31 // pred_check_branch
          %365 = sbr.rel (%p363) target = $region36
        $region35: #{tpu_custom_call.1} parent=31 // pred_region
          %366 = dma.done %s359, 128
        $region36: #{tpu_custom_call.1} parent=31 // pred_fallthru
          _
        %s367 = sand.u32 %s27, 1
        %s368 = scalar_lea.sflag [#allocation6], %s367
        %s369 = sand.u32 %s89, 1
        %s370 = smul.addr %s369, 8
        %s371 = scalar_lea.vmem [#allocation5], %s370
        // Predicated region
        $region37: #{tpu_custom_call.1} parent=31 // pred_check
          %p372 = pneg %p102
        $region38: #{tpu_custom_call.1} parent=31 // pred_check_branch
          %374 = sbr.rel (%p372) target = $region40
        $region39: #{tpu_custom_call.1} parent=31 // pred_region
          %375 = dma.done %s368, 128
        $region40: #{tpu_custom_call.1} parent=31 // pred_fallthru
          _
        %s376 = sand.u32 %s27, 1
        %s377 = scalar_lea.sflag [#allocation6], %s376
        %s378 = sand.u32 %s123, 1
        %s379 = smul.addr %s378, 8
        %s380 = scalar_lea.vmem [#allocation7], %s379
        // Predicated region
        $region41: #{tpu_custom_call.1} parent=31 // pred_check
          %p381 = pneg %p136
        $region42: #{tpu_custom_call.1} parent=31 // pred_check_branch
          %383 = sbr.rel (%p381) target = $region44
        $region43: #{tpu_custom_call.1} parent=31 // pred_region
          %384 = dma.done %s377, 128
        $region44: #{tpu_custom_call.1} parent=31 // pred_fallthru
          _
        %s385 = sand.u32 %s55, 1
        %s386 = scalar_lea.sflag [#allocation3], %s385
        %s387 = sand.u32 %s55, 1
        %s388 = smul.addr %s387, 8
        %s389 = scalar_lea.vmem [#allocation2], %s388
        %p390 = pneg %p68
        %p391 = pneg %p65
        %s392 = sand.u32 %s27, 1
        %s393 = scalar_lea.sflag [#allocation6], %s392
        %s394 = sand.u32 %s89, 1
        %s395 = smul.addr %s394, 8
        %s396 = scalar_lea.vmem [#allocation5], %s395
        %p397 = pneg %p102
        %p398 = pneg %p99
        %s399 = sand.u32 %s27, 1
        %s400 = scalar_lea.sflag [#allocation6], %s399
        %s401 = sand.u32 %s123, 1
        %s402 = smul.addr %s401, 8
        %s403 = scalar_lea.vmem [#allocation7], %s402
        %p404 = pneg %p136
        %p405 = pneg %p133
        %p406 = pneg %p162
        %p407 = pneg %p159
        %p408 = scmp.lt.s32.totalorder %s31, 0
        %s409 = scalar_select %p408, %s31, 0
        %s410 = smul.addr %s409, 8
        %s411 = scalar_lea.vmem %s3, %s410
        %p412 = pneg %p188
        %p413 = pneg %p185
        %p414 = scmp.lt.s32.totalorder %s31, 0
        %s415 = scalar_select %p414, %s31, 0
        %s416 = smul.addr %s415, 8
        %s417 = scalar_lea.vmem %s4, %s416
        %p418 = pneg %p214
        %p419 = pneg %p211
        %p420 = pneg %p240
        %p421 = pneg %p237
        %p422 = pneg %p266
        %p423 = pneg %p263
        %s424 = smul.u32 %s31, 3
        %s425 = sadd.s32 %s424, %s32
        %p426 = scmp.lt.s32.totalorder %s425, 2
        %s427 = scalar_select %p426, %s425, 2
        %s428 = smul.u32 %s31, 3
        %s429 = sadd.s32 %s428, %s32
        %p430 = scmp.lt.s32.totalorder %s429, 2
        %s431 = scalar_select %p430, %s429, 2
        %s432 = smul.u32 %s31, 3
        %s433 = sadd.s32 %s432, %s32
        %p434 = scmp.lt.s32.totalorder %s433, 2
        %s435 = scalar_select %p434, %s433, 2
        %p436 = scmp.lt.s32.totalorder %s31, 0
        %s437 = scalar_select %p436, %s31, 0
        %s438 = smul.addr %s437, 8
        %s439 = scalar_lea.vmem %s3, %s438
        %p440 = scmp.lt.s32.totalorder %s31, 0
        %s441 = scalar_select %p440, %s31, 0
        %s442 = smul.addr %s441, 8
        %s443 = scalar_lea.vmem %s4, %s442
        %p444 = scmp.eq.s32.totalorder %s32, 0
        // Predicated region
        $region45: #{tpu_custom_call.1} parent=31 // pred_check
          %p445 = pneg %p444
        $region46: #{tpu_custom_call.1} parent=31 // pred_check_branch
          %447 = sbr.rel (%p445) target = $region48
        $region47: #{tpu_custom_call.1} parent=31 // pred_region
          %448 = vst [vmem:[%s439] sm:$0x3f] 0.0
          %449 = vst [vmem:[%s443] sm:$0x3f] 0.0
          %450 = vst [vmem:[#allocation8] sm:$0x1] 0.0
          %451 = vst [vmem:[#allocation9] sm:$0x1] 0.0
          %452 = vst [vmem:[#allocation11] sm:$0x1] 0.0
        $region48: #{tpu_custom_call.1} parent=31 // pred_fallthru
          _
        %s453 = smul.u32 %s31, 3
        %s454 = sadd.s32 %s453, %s32
        %s455 = smul.u32 %s454, 128
        %v456 = vlaneseq
        %v457 = vand.u32 %v456, 127
        %v458 = vld [vmem:[%s362] sm:$0x3f]
        %v459 = vld [vmem:[%s371] sm:$0x3f]
        %v460 = vld [vmem:[%s380] sm:$0x3f]
        %v461 = vstv %s455
        %v462 = vadd.s32 %v457, %v461
        %vm463 = vcmp.lt.s32.totalorder %v462, 300
        %v464 = vsel %vm463, 1, 0
        %vm465 = vcmp.eq.s32.totalorder %v464, 1
        %v466 = vsel %vm465, %v458, 0.0
        %v467 = vsel %vm465, %v459, 0.0
        %v468 = vsel %vm465, %v460, 0.0
        %v469 = vmul.f32 %v466, %v467
        %v470 = vmul.f32 %v466, %v468
        %v471 = vadd.f32 %v469, 0.0
        %v472 = vadd.f32 %v470, 0.0
        %v473 = vand.u32 2147483647, %v466
        %vm474 = vcmask 1045504
        %v475 = vsel %vm474, %v473, 0.0
        %v476 = vrot.slane %v475, 4
        %v477 = vadd.f32 %v475, %v476
        %v478 = vrot.slane %v477, 2
        %v479 = vadd.f32 %v477, %v478
        %v480 = vrot.slane %v479, 1
        %v481 = vadd.f32 %v479, %v480
        %v482 = vand.u32 2147483647, %v467
        %v483 = vsel %vm474, %v482, 0.0
        %v484 = vrot.slane %v483, 4
        %v485 = vadd.f32 %v483, %v484
        %v486 = vrot.slane %v485, 2
        %v487 = vadd.f32 %v485, %v486
        %v488 = vrot.slane %v487, 1
        %v489 = vadd.f32 %v487, %v488
        %v490 = vand.u32 2147483647, %v468
        %v491 = vsel %vm474, %v490, 0.0
        %v492 = vrot.slane %v491, 4
        %v493 = vadd.f32 %v491, %v492
        %v494 = vrot.slane %v493, 2
        %v495 = vadd.f32 %v493, %v494
        %v496 = vrot.slane %v495, 1
        %v497 = vadd.f32 %v495, %v496
        %v498 = vmul.f32 %v481, %v481
        %v499 = vadd.f32 %v498, 0.0
        %v500 = vmul.f32 %v489, %v489
        %v501 = vadd.f32 %v500, 0.0
        %v502 = vmul.f32 %v497, %v497
        %v503 = vadd.f32 %v502, 0.0
        %v504 = vld [vmem:[%s439] sm:$0x3f]
        %v505 = vadd.f32 %v504, %v471
        %506 = vst [vmem:[%s439] sm:$0x3f] %v505
        %v507 = vld [vmem:[%s443] sm:$0x3f]
        %v508 = vadd.f32 %v507, %v472
        %509 = vst [vmem:[%s443] sm:$0x3f] %v508
        %v510 = vld [vmem:[#allocation8] sm:$0x1]
        %v511 = vadd.f32 %v510, %v499
        %512 = vst [vmem:[#allocation8] sm:$0x1] %v511
        %v513 = vld [vmem:[#allocation9] sm:$0x1]
        %v514 = vadd.f32 %v513, %v501
        %515 = vst [vmem:[#allocation9] sm:$0x1] %v514
        %v516 = vld [vmem:[#allocation11] sm:$0x1]
        %v517 = vadd.f32 %v516, %v503
        %518 = vst [vmem:[#allocation11] sm:$0x1] %v517
        %p519 = scmp.lt.s32.totalorder %s31, 0
        %s520 = scalar_select %p519, %s31, 0
        %s521 = smul.addr %s520, 8
        %s522 = scalar_lea.vmem %s3, %s521
        %p523 = scmp.lt.s32.totalorder %s31, 0
        %s524 = scalar_select %p523, %s31, 0
        %s525 = smul.addr %s524, 8
        %s526 = scalar_lea.vmem %s4, %s525
        // Predicated region
        $region49: #{tpu_custom_call.1} parent=31 // pred_check
          %p527 = pneg %p159
        $region50: #{tpu_custom_call.1} parent=31 // pred_check_branch
          %529 = sbr.rel (%p527) target = $region52
        $region51: #{tpu_custom_call.1} parent=31 // pred_region
          _
        $region52: #{tpu_custom_call.1} parent=31 // pred_fallthru
          _
        // Predicated region
        $region53: #{tpu_custom_call.1} parent=31 // pred_check
          %p530 = pneg %p185
        $region54: #{tpu_custom_call.1} parent=31 // pred_check_branch
          %532 = sbr.rel (%p530) target = $region56
        $region55: #{tpu_custom_call.1} parent=31 // pred_region
          _
        $region56: #{tpu_custom_call.1} parent=31 // pred_fallthru
          _
        // Predicated region
        $region57: #{tpu_custom_call.1} parent=31 // pred_check
          %p533 = pneg %p211
        $region58: #{tpu_custom_call.1} parent=31 // pred_check_branch
          %535 = sbr.rel (%p533) target = $region60
        $region59: #{tpu_custom_call.1} parent=31 // pred_region
          %s537 = ssub.s32 16, 16
          %538 = vsyncadd [#allocation4], %s537
          %s539 = smul.addr %s31, 16
          %s540 = scalar_lea.hbm %s5, %s539
          %s542 = sshll.u32 [#allocation8], 4
          %s543 = int_to_ptr.vmem [resolvable:$true] %s542
          %545 = dma.vmem_to_hbm [thread:$0]  %s543, 16, %s540, [#allocation4]
        $region60: #{tpu_custom_call.1} parent=31 // pred_fallthru
          _
        // Predicated region
        $region61: #{tpu_custom_call.1} parent=31 // pred_check
          %p546 = pneg %p237
        $region62: #{tpu_custom_call.1} parent=31 // pred_check_branch
          %548 = sbr.rel (%p546) target = $region64
        $region63: #{tpu_custom_call.1} parent=31 // pred_region
          %s550 = ssub.s32 16, 16
          %551 = vsyncadd [#allocation10], %s550
          %s552 = smul.addr %s31, 16
          %s553 = scalar_lea.hbm %s6, %s552
          %s555 = sshll.u32 [#allocation9], 4
          %s556 = int_to_ptr.vmem [resolvable:$true] %s555
          %558 = dma.vmem_to_hbm [thread:$0]  %s556, 16, %s553, [#allocation10]
        $region64: #{tpu_custom_call.1} parent=31 // pred_fallthru
          _
        // Predicated region
        $region65: #{tpu_custom_call.1} parent=31 // pred_check
          %p559 = pneg %p263
        $region66: #{tpu_custom_call.1} parent=31 // pred_check_branch
          %561 = sbr.rel (%p559) target = $region68
        $region67: #{tpu_custom_call.1} parent=31 // pred_region
          %s563 = ssub.s32 16, 16
          %564 = vsyncadd [#allocation10], %s563
          %s565 = smul.addr %s31, 16
          %s566 = scalar_lea.hbm %s7, %s565
          %s568 = sshll.u32 [#allocation11], 4
          %s569 = int_to_ptr.vmem [resolvable:$true] %s568
          %571 = dma.vmem_to_hbm [thread:$0]  %s569, 16, %s566, [#allocation10]
        $region68: #{tpu_custom_call.1} parent=31 // pred_fallthru
          _
        // Predicated region
        $region69: #{tpu_custom_call.1} parent=31 // pred_check
          %p572 = pneg %p159
        $region70: #{tpu_custom_call.1} parent=31 // pred_check_branch
          %574 = sbr.rel (%p572) target = $region72
        $region71: #{tpu_custom_call.1} parent=31 // pred_region
          %p575 = scmp.lt.s32.totalorder %s31, 0
          %s576 = scalar_select %p575, %s31, 0
          %s577 = smul.addr %s576, 8
          %s578 = scalar_lea.vmem %s3, %s577
        $region72: #{tpu_custom_call.1} parent=31 // pred_fallthru
          _
        // Predicated region
        $region73: #{tpu_custom_call.1} parent=31 // pred_check
          %p579 = pneg %p185
        $region74: #{tpu_custom_call.1} parent=31 // pred_check_branch
          %581 = sbr.rel (%p579) target = $region76
        $region75: #{tpu_custom_call.1} parent=31 // pred_region
          %p582 = scmp.lt.s32.totalorder %s31, 0
          %s583 = scalar_select %p582, %s31, 0
          %s584 = smul.addr %s583, 8
          %s585 = scalar_lea.vmem %s4, %s584
        $region76: #{tpu_custom_call.1} parent=31 // pred_fallthru
          _
        // Predicated region
        $region77: #{tpu_custom_call.1} parent=31 // pred_check
          %p586 = pneg %p211
        $region78: #{tpu_custom_call.1} parent=31 // pred_check_branch
          %588 = sbr.rel (%p586) target = $region80
        $region79: #{tpu_custom_call.1} parent=31 // pred_region
          %589 = dma.done [#allocation4], 16
        $region80: #{tpu_custom_call.1} parent=31 // pred_fallthru
          _
        // Predicated region
        $region81: #{tpu_custom_call.1} parent=31 // pred_check
          %p590 = pneg %p237
        $region82: #{tpu_custom_call.1} parent=31 // pred_check_branch
          %592 = sbr.rel (%p590) target = $region84
        $region83: #{tpu_custom_call.1} parent=31 // pred_region
          %593 = dma.done [#allocation10], 16
        $region84: #{tpu_custom_call.1} parent=31 // pred_fallthru
          _
        // Predicated region
        $region85: #{tpu_custom_call.1} parent=31 // pred_check
          %p594 = pneg %p263
        $region86: #{tpu_custom_call.1} parent=31 // pred_check_branch
          %596 = sbr.rel (%p594) target = $region88
        $region87: #{tpu_custom_call.1} parent=31 // pred_region
          %597 = dma.done [#allocation10], 16
        $region88: #{tpu_custom_call.1} parent=31 // pred_fallthru
          _
      $region32: #{tpu_custom_call.1} parent=5 // pred_fallthru
        _
      %p598 = scmp.le.s32.totalorder 2, %s22
      // Predicated region
      $region89: #{tpu_custom_call.1} parent=5 // pred_check
        %p599 = pneg %p598
      $region90: #{tpu_custom_call.1} parent=5 // pred_check_branch
        %601 = sbr.rel (%p599) target = $region92
      $region91: #{tpu_custom_call.1} parent=5 // pred_region
        %s602 = ssub.s32 %s22, 2
      $region92: #{tpu_custom_call.1} parent=5 // pred_fallthru
        _
    $region6: #{tpu_custom_call.1} parent=1 // loop_footer
      %s26 = sadd.s32 1, %s22
    $region7: #{tpu_custom_call.1} parent=1 // loop_footer_branch
      %21 = sbr.rel target = $region3
    $region8: #{tpu_custom_call.1} parent=1 // loop_exit
      _
    %603 = vsyncpa [#allocation3], 1
    %s604 = scalar_lea.sflag [#allocation3], 1
    %605 = vsyncpa %s604, 1
    %606 = vsyncpa [#allocation6], 1
    %s607 = scalar_lea.sflag [#allocation6], 1
    %608 = vsyncpa %s607, 1
    %609 = vsyncpa [#allocation4], 1
    %s610 = scalar_lea.sflag [#allocation4], 1
    %611 = vsyncpa %s610, 1
    %612 = vsyncpa [#allocation10], 1

</llo_original>
